<compile_context>
chip_gen: v7x
topology: tpu7x:2x2x1
jax: 0.10.0
libtpu: 0.0.40
codegen_flags: <defaults>
</compile_context>

<pallas_src>
import jax
import jax.numpy as jnp
from jax.experimental import pallas as pl
from jax.experimental.pallas import tpu as pltpu

MAX_LENGTH = 30
HIDDEN_SIZE = 32
OUTPUT_SIZE = 64  # vocab size

_NEG_MASK = -1e30  # softmax mask value for padded attention columns

# Packed weight slab column layout (H rows, bf16):
#   [0        : Lp      )  wa_h   hidden rows of attn Linear
#   [Lp       : Lp+3H   )  gwh    GRU weight_hh^T (r, z, n)       -> hidden-LHS pack
#   [Lp+3H    : 2Lp+3H  )  wa_e   embedded rows of attn Linear
#   [2Lp+3H   : 2Lp+4H  )  wc_e   embedded rows of attn_combine   -> embedded-LHS pack
#   [2Lp+4H   : 2Lp+5H  )  wc_c   context rows of attn_combine
#   [2Lp+5H   : 2Lp+8H  )  gwi    GRU weight_ih^T (r, z, n)
#   [2Lp+8H   : 2Lp+8H+V)  ow     output Linear^T
# Packed bias slab (1 row, f32): [ba(Lp) | bc(H) | gbi(3H) | gbh(3H) | ob(V)]


def attn_decoder_kernel(tok_ref, emb_tbl_ref, hid_ref, enc_ref, w_ref, b_ref, out_ref):
    H = hid_ref.shape[1]
    Lp = enc_ref.shape[0]
    V = emb_tbl_ref.shape[0]

    def bdot(a, b):  # single-pass bf16 MXU dot, f32 accumulate
        return jnp.dot(a.astype(jnp.bfloat16), b.astype(jnp.bfloat16),
                       preferred_element_type=jnp.float32)

    # --- embedding gather inside the kernel (dropout = identity, eval mode) ---
    tok = tok_ref[0]
    emb = emb_tbl_ref[pl.ds(tok, 1), :]                 # (1, H) f32
    h = hid_ref[...]                                    # (1, H) f32

    # --- unpack biases (static slices of one (1, 320) slab) ---
    b = b_ref[...]
    ba = b[:, 0:Lp]
    bc = b[:, Lp:Lp + H]
    gbi = b[:, Lp + H:Lp + 4 * H]
    gbh = b[:, Lp + 4 * H:Lp + 7 * H]
    ob = b[:, Lp + 7 * H:Lp + 7 * H + V]

    # --- two independent LHS-shared dots (overlap; off the dependent chain) ---
    hpack = bdot(h, w_ref[:, 0:Lp + 3 * H])                     # (1, Lp+3H)
    epack = bdot(emb, w_ref[:, Lp + 3 * H:2 * Lp + 4 * H])      # (1, Lp+H)
    s_h, gh = hpack[:, 0:Lp], hpack[:, Lp:Lp + 3 * H]
    s_e, x_e = epack[:, 0:Lp], epack[:, Lp:Lp + H]

    # --- attention softmax (padded columns carry -1e30 bias -> exactly 0 weight) ---
    s = s_e + s_h + ba
    s = s - jnp.max(s, axis=1, keepdims=True)
    es = jnp.exp(s)
    aw = es * pl.reciprocal(jnp.sum(es, axis=1, keepdims=True), approx=True)  # (1, Lp)

    # --- dependent chain: ctx -> combine+relu -> GRU -> logits ---
    ctx = bdot(aw, enc_ref[...])                                               # (1, H)
    x = x_e + bdot(ctx, w_ref[:, 2 * Lp + 4 * H:2 * Lp + 5 * H]) + bc
    x = jnp.maximum(x, 0.0)

    gi = bdot(x, w_ref[:, 2 * Lp + 5 * H:2 * Lp + 8 * H]) + gbi               # (1, 3H)
    ghb = gh + gbh
    r = jax.nn.sigmoid(gi[:, 0:H] + ghb[:, 0:H])
    z = jax.nn.sigmoid(gi[:, H:2 * H] + ghb[:, H:2 * H])
    n = jnp.tanh(gi[:, 2 * H:3 * H] + r * ghb[:, 2 * H:3 * H])
    h_new = (1.0 - z) * n + z * h                                              # (1, H)

    logits = bdot(h_new, w_ref[:, 2 * Lp + 8 * H:2 * Lp + 8 * H + V]) + ob
    m = jnp.max(logits, axis=1, keepdims=True)
    sh = logits - m
    logp = sh - jnp.log(jnp.sum(jnp.exp(sh), axis=1, keepdims=True))           # (1, V)

    # --- single lane-dense store: [log_probs | new_hidden | attn_weights] ---
    out_ref[...] = jnp.concatenate([logp, h_new, aw], axis=1)   # (1, V+H+Lp) = (1, 128)


def init_params(key, hidden_size=HIDDEN_SIZE, output_size=OUTPUT_SIZE,
                max_length=MAX_LENGTH):
    H, V, L = hidden_size, output_size, max_length
    Lp = ((L + 7) // 8) * 8
    ks = jax.random.split(key, 10)
    s = 0.1

    emb_tbl = s * jax.random.normal(ks[0], (V, H), jnp.float32)

    # PyTorch-layout weights, then transpose / split / pack
    wa = s * jax.random.normal(ks[1], (L, 2 * H), jnp.float32)     # attn: Linear(2H->L)
    ba = s * jax.random.normal(ks[2], (L,), jnp.float32)
    wc = s * jax.random.normal(ks[3], (H, 2 * H), jnp.float32)     # attn_combine
    bc = s * jax.random.normal(ks[4], (H,), jnp.float32)
    wih = s * jax.random.normal(ks[5], (3 * H, H), jnp.float32)    # GRU weight_ih (r,z,n)
    whh = s * jax.random.normal(ks[6], (3 * H, H), jnp.float32)    # GRU weight_hh (r,z,n)
    bih = s * jax.random.normal(ks[7], (3 * H,), jnp.float32)
    bhh = s * jax.random.normal(ks[8], (3 * H,), jnp.float32)
    wo = s * jax.random.normal(ks[9], (V, H), jnp.float32)         # out: Linear(H->V)
    bo = jnp.zeros((V,), jnp.float32)

    waT = wa.T                                   # (2H, L)
    wa_e = jnp.zeros((H, Lp), jnp.float32).at[:, :L].set(waT[:H])
    wa_h = jnp.zeros((H, Lp), jnp.float32).at[:, :L].set(waT[H:])
    ba_p = jnp.full((Lp,), _NEG_MASK, jnp.float32).at[:L].set(ba)

    wcT = wc.T                                   # (2H, H)
    wc_e, wc_c = wcT[:H], wcT[H:]
    gwi, gwh = wih.T, whh.T                      # (H, 3H) each
    ow = wo.T                                    # (H, V)

    W = jnp.concatenate([wa_h, gwh, wa_e, wc_e, wc_c, gwi, ow],
                        axis=1).astype(jnp.bfloat16)                # (H, 2Lp+8H+V)
    B = jnp.concatenate([ba_p, bc, bih, bhh, bo]).reshape(1, -1)    # (1, Lp+7H+V) f32

    return {"emb": emb_tbl, "W": W, "B": B}


@jax.jit
def attn_decoder_forward(token, hidden, encoder_outputs_padded, params):
    """token: (1,1) int; hidden: (1,1,H); encoder_outputs_padded: (Lp, H) f32."""
    V, H = params["emb"].shape
    Lp = encoder_outputs_padded.shape[0]
    L = MAX_LENGTH

    tok = token.reshape((1,)).astype(jnp.int32)
    h0 = hidden.reshape(1, H).astype(jnp.float32)
    enc = encoder_outputs_padded.astype(jnp.float32)

    vmem = pl.BlockSpec(memory_space=pltpu.MemorySpace.VMEM)
    slab = pl.pallas_call(
        attn_decoder_kernel,
        out_shape=jax.ShapeDtypeStruct((1, V + H + Lp), jnp.float32),
        grid_spec=pltpu.PrefetchScalarGridSpec(
            num_scalar_prefetch=1,      # token id -> SMEM
            grid=(1,),
            in_specs=[vmem, vmem, vmem, vmem, vmem],
            out_specs=vmem,
        ),
        compiler_params=pltpu.CompilerParams(dimension_semantics=("arbitrary",)),
    )(tok, params["emb"], h0, enc, params["W"], params["B"])

    logp = slab[:, :V]
    h_new = slab[:, V:V + H]
    aw = slab[:, V + H:V + H + L]
    return logp, h_new.reshape(1, 1, H), aw


def reference_forward(token, hidden, encoder_outputs_padded, params):
    """Pure-JAX reference using the same packed params and matching bf16 dot precision."""
    V, H = params["emb"].shape
    Lp = encoder_outputs_padded.shape[0]
    L = MAX_LENGTH
    W, B = params["W"], params["B"]

    def bdot(a, b):
        return jnp.dot(a.astype(jnp.bfloat16), b.astype(jnp.bfloat16),
                       preferred_element_type=jnp.float32)

    emb = params["emb"][token.reshape(()).astype(jnp.int32)].reshape(1, H)
    h = hidden.reshape(1, H).astype(jnp.float32)
    enc = encoder_outputs_padded.astype(jnp.float32)

    ba = B[:, 0:Lp]
    bc = B[:, Lp:Lp + H]
    gbi = B[:, Lp + H:Lp + 4 * H]
    gbh = B[:, Lp + 4 * H:Lp + 7 * H]
    ob = B[:, Lp + 7 * H:Lp + 7 * H + V]

    hpack = bdot(h, W[:, 0:Lp + 3 * H])
    epack = bdot(emb, W[:, Lp + 3 * H:2 * Lp + 4 * H])
    s = epack[:, :Lp] + hpack[:, :Lp] + ba
    aw = jax.nn.softmax(s, axis=1)
    ctx = bdot(aw, enc)
    x = jax.nn.relu(epack[:, Lp:] + bdot(ctx, W[:, 2 * Lp + 4 * H:2 * Lp + 5 * H]) + bc)
    gi = bdot(x, W[:, 2 * Lp + 5 * H:2 * Lp + 8 * H]) + gbi
    gh = hpack[:, Lp:] + gbh
    r = jax.nn.sigmoid(gi[:, :H] + gh[:, :H])
    z = jax.nn.sigmoid(gi[:, H:2 * H] + gh[:, H:2 * H])
    n = jnp.tanh(gi[:, 2 * H:] + r * gh[:, 2 * H:])
    h_new = (1.0 - z) * n + z * h
    logits = bdot(h_new, W[:, 2 * Lp + 8 * H:2 * Lp + 8 * H + V]) + ob
    logp = jax.nn.log_softmax(logits, axis=1)
    return logp, h_new.reshape(1, 1, H), aw[:, :L]


if __name__ == "__main__":
    key = jax.random.PRNGKey(0)
    kp, kh, ke = jax.random.split(key, 3)

    params = init_params(kp)

    token = jnp.array([[5]], dtype=jnp.int32)                            # (1, 1)
    hidden = jax.random.normal(kh, (1, 1, HIDDEN_SIZE), jnp.float32)     # (1, 1, H)
    encoder_outputs = jax.random.normal(ke, (MAX_LENGTH, HIDDEN_SIZE),
                                        jnp.float32)                     # (L, H)

    # pad encoder outputs once (at encode time), not on every decode step
    Lp = ((MAX_LENGTH + 7) // 8) * 8
    enc_padded = jnp.zeros((Lp, HIDDEN_SIZE), jnp.float32).at[:MAX_LENGTH].set(
        encoder_outputs)

    output, new_hidden, attn_weights = attn_decoder_forward(
        token, hidden, enc_padded, params)
    jax.block_until_ready((output, new_hidden, attn_weights))

    ref_out, ref_h, ref_aw = reference_forward(token, hidden, enc_padded, params)

    # sanity + correctness (tolerances cover the EUP approx reciprocal + bf16 weights)
    assert output.shape == (1, OUTPUT_SIZE)
    assert new_hidden.shape == (1, 1, HIDDEN_SIZE)
    assert attn_weights.shape == (1, MAX_LENGTH)
    assert bool(jnp.all(jnp.isfinite(output)))
    assert abs(float(jnp.sum(attn_weights)) - 1.0) < 1e-2
    assert abs(float(jnp.sum(jnp.exp(output))) - 1.0) < 1e-2
    assert bool(jnp.allclose(output, ref_out, atol=1e-2))
    assert bool(jnp.allclose(new_hidden, ref_h, atol=1e-2))
    assert bool(jnp.allclose(attn_weights, ref_aw, atol=5e-3))

    print("KERNEL_OK")
</pallas_src>

<mosaic_0001>
module attributes {stable_mosaic.version = 11 : i64} {
  func.func @attn_decoder_kernel(%arg0: i32, %arg1: memref<1xi32, #tpu.memory_space<smem>>, %arg2: memref<64x32xf32, #tpu.memory_space<vmem>>, %arg3: memref<1x32xf32, #tpu.memory_space<vmem>>, %arg4: memref<32x32xf32, #tpu.memory_space<vmem>>, %arg5: memref<32x384xbf16, #tpu.memory_space<vmem>>, %arg6: memref<1x320xf32, #tpu.memory_space<vmem>>, %arg7: memref<1x128xf32, #tpu.memory_space<vmem>>) attributes {dimension_semantics = [#tpu.dimension_semantics<arbitrary>], iteration_bounds = array<i64: 1>, scalar_prefetch = 1 : i64, scratch_operands = 0 : i64, tpu.core_type = #tpu.core_type<tc>, window_params = [{pipeline_mode = #tpu.pipeline_mode<synchronous>, transform_indices = @transform_0, window_bounds = array<i64: 64, 32>}, {pipeline_mode = #tpu.pipeline_mode<synchronous>, transform_indices = @transform_1, window_bounds = array<i64: 1, 32>}, {pipeline_mode = #tpu.pipeline_mode<synchronous>, transform_indices = @transform_2, window_bounds = array<i64: 32, 32>}, {pipeline_mode = #tpu.pipeline_mode<synchronous>, transform_indices = @transform_3, window_bounds = array<i64: 32, 384>}, {pipeline_mode = #tpu.pipeline_mode<synchronous>, transform_indices = @transform_4, window_bounds = array<i64: 1, 320>}, {pipeline_mode = #tpu.pipeline_mode<synchronous>, transform_indices = @transform_5, window_bounds = array<i64: 1, 128>}]} {
    %c0 = arith.constant 0 : index
    %0 = memref.load %arg1[%c0] : memref<1xi32, #tpu.memory_space<smem>>
    %1 = arith.index_cast %0 : i32 to index
    %c0_0 = arith.constant 0 : index
    %2 = vector.load %arg2[%1, %c0_0] : memref<64x32xf32, #tpu.memory_space<vmem>>, vector<1x32xf32>
    %c0_1 = arith.constant 0 : index
    %c0_2 = arith.constant 0 : index
    %3 = vector.load %arg3[%c0_1, %c0_2] : memref<1x32xf32, #tpu.memory_space<vmem>>, vector<1x32xf32>
    %c0_3 = arith.constant 0 : index
    %c0_4 = arith.constant 0 : index
    %4 = vector.load %arg6[%c0_3, %c0_4] : memref<1x320xf32, #tpu.memory_space<vmem>>, vector<1x320xf32>
    %5 = vector.extract_strided_slice %4 {offsets = [0, 0], sizes = [1, 32], strides = [1, 1]} : vector<1x320xf32> to vector<1x32xf32>
    %6 = vector.extract_strided_slice %4 {offsets = [0, 32], sizes = [1, 32], strides = [1, 1]} : vector<1x320xf32> to vector<1x32xf32>
    %7 = vector.extract_strided_slice %4 {offsets = [0, 64], sizes = [1, 96], strides = [1, 1]} : vector<1x320xf32> to vector<1x96xf32>
    %8 = vector.extract_strided_slice %4 {offsets = [0, 160], sizes = [1, 96], strides = [1, 1]} : vector<1x320xf32> to vector<1x96xf32>
    %9 = vector.extract_strided_slice %4 {offsets = [0, 256], sizes = [1, 64], strides = [1, 1]} : vector<1x320xf32> to vector<1x64xf32>
    %c0_5 = arith.constant 0 : index
    %c0_6 = arith.constant 0 : index
    %10 = vector.load %arg5[%c0_5, %c0_6] : memref<32x384xbf16, #tpu.memory_space<vmem>>, vector<32x128xbf16>
    %11 = arith.truncf %3 : vector<1x32xf32> to vector<1x32xbf16>
    %cst = arith.constant dense<0.000000e+00> : vector<1x128xf32>
    %12 = tpu.matmul %11, %10, %cst {dimension_numbers = #tpu.dot_dimension_numbers<[1], [0], [0], [1], [0, 0, 1, 1], [], []>} : vector<1x32xbf16>, vector<32x128xbf16>, vector<1x128xf32> -> vector<1x128xf32>
    %c0_7 = arith.constant 0 : index
    %c128 = arith.constant 128 : index
    %13 = vector.load %arg5[%c0_7, %c128] : memref<32x384xbf16, #tpu.memory_space<vmem>>, vector<32x64xbf16>
    %14 = arith.truncf %2 : vector<1x32xf32> to vector<1x32xbf16>
    %cst_8 = arith.constant dense<0.000000e+00> : vector<1x64xf32>
    %15 = tpu.matmul %14, %13, %cst_8 {dimension_numbers = #tpu.dot_dimension_numbers<[1], [0], [0], [1], [0, 0, 1, 1], [], []>} : vector<1x32xbf16>, vector<32x64xbf16>, vector<1x64xf32> -> vector<1x64xf32>
    %16 = vector.extract_strided_slice %12 {offsets = [0, 0], sizes = [1, 32], strides = [1, 1]} : vector<1x128xf32> to vector<1x32xf32>
    %17 = vector.extract_strided_slice %12 {offsets = [0, 32], sizes = [1, 96], strides = [1, 1]} : vector<1x128xf32> to vector<1x96xf32>
    %18 = vector.extract_strided_slice %15 {offsets = [0, 0], sizes = [1, 32], strides = [1, 1]} : vector<1x64xf32> to vector<1x32xf32>
    %19 = vector.extract_strided_slice %15 {offsets = [0, 32], sizes = [1, 32], strides = [1, 1]} : vector<1x64xf32> to vector<1x32xf32>
    %20 = arith.addf %18, %16 : vector<1x32xf32>
    %21 = arith.addf %20, %5 : vector<1x32xf32>
    %cst_9 = arith.constant dense<0xFF800000> : vector<1xf32>
    %22 = vector.multi_reduction <maximumf>, %21, %cst_9 [1] : vector<1x32xf32> to vector<1xf32>
    %23 = vector.shape_cast %22 : vector<1xf32> to vector<1x1xf32>
    %24 = vector.broadcast %23 : vector<1x1xf32> to vector<1x32xf32>
    %25 = arith.subf %21, %24 : vector<1x32xf32>
    %26 = math.exp %25 : vector<1x32xf32>
    %cst_10 = arith.constant dense<0.000000e+00> : vector<1xf32>
    %27 = vector.multi_reduction <add>, %26, %cst_10 [1] : vector<1x32xf32> to vector<1xf32>
    %28 = vector.shape_cast %27 : vector<1xf32> to vector<1x1xf32>
    %29 = tpu.reciprocal %28 {approx = true} : vector<1x1xf32> -> vector<1x1xf32>
    %30 = vector.broadcast %29 : vector<1x1xf32> to vector<1x32xf32>
    %31 = arith.mulf %26, %30 : vector<1x32xf32>
    %c0_11 = arith.constant 0 : index
    %c0_12 = arith.constant 0 : index
    %32 = vector.load %arg4[%c0_11, %c0_12] : memref<32x32xf32, #tpu.memory_space<vmem>>, vector<32x32xf32>
    %33 = arith.truncf %31 : vector<1x32xf32> to vector<1x32xbf16>
    %34 = arith.truncf %32 : vector<32x32xf32> to vector<32x32xbf16>
    %cst_13 = arith.constant dense<0.000000e+00> : vector<1x32xf32>
    %35 = tpu.matmul %33, %34, %cst_13 {dimension_numbers = #tpu.dot_dimension_numbers<[1], [0], [0], [1], [0, 0, 1, 1], [], []>} : vector<1x32xbf16>, vector<32x32xbf16>, vector<1x32xf32> -> vector<1x32xf32>
    %c0_14 = arith.constant 0 : index
    %c192 = arith.constant 192 : index
    %36 = vector.load %arg5[%c0_14, %c192] : memref<32x384xbf16, #tpu.memory_space<vmem>>, vector<32x32xbf16>
    %37 = arith.truncf %35 : vector<1x32xf32> to vector<1x32xbf16>
    %cst_15 = arith.constant dense<0.000000e+00> : vector<1x32xf32>
    %38 = tpu.matmul %37, %36, %cst_15 {dimension_numbers = #tpu.dot_dimension_numbers<[1], [0], [0], [1], [0, 0, 1, 1], [], []>} : vector<1x32xbf16>, vector<32x32xbf16>, vector<1x32xf32> -> vector<1x32xf32>
    %39 = arith.addf %19, %38 : vector<1x32xf32>
    %40 = arith.addf %39, %6 : vector<1x32xf32>
    %cst_16 = arith.constant 0.000000e+00 : f32
    %41 = vector.broadcast %cst_16 : f32 to vector<1x32xf32>
    %42 = arith.maximumf %40, %41 : vector<1x32xf32>
    %c0_17 = arith.constant 0 : index
    %c224 = arith.constant 224 : index
    %43 = vector.load %arg5[%c0_17, %c224] : memref<32x384xbf16, #tpu.memory_space<vmem>>, vector<32x96xbf16>
    %44 = arith.truncf %42 : vector<1x32xf32> to vector<1x32xbf16>
    %cst_18 = arith.constant dense<0.000000e+00> : vector<1x96xf32>
    %45 = tpu.matmul %44, %43, %cst_18 {dimension_numbers = #tpu.dot_dimension_numbers<[1], [0], [0], [1], [0, 0, 1, 1], [], []>} : vector<1x32xbf16>, vector<32x96xbf16>, vector<1x96xf32> -> vector<1x96xf32>
    %46 = arith.addf %45, %7 : vector<1x96xf32>
    %47 = arith.addf %17, %8 : vector<1x96xf32>
    %48 = vector.extract_strided_slice %46 {offsets = [0, 0], sizes = [1, 32], strides = [1, 1]} : vector<1x96xf32> to vector<1x32xf32>
    %49 = vector.extract_strided_slice %47 {offsets = [0, 0], sizes = [1, 32], strides = [1, 1]} : vector<1x96xf32> to vector<1x32xf32>
    %50 = arith.addf %48, %49 : vector<1x32xf32>
    %51 = arith.negf %50 : vector<1x32xf32>
    %52 = math.exp %51 : vector<1x32xf32>
    %cst_19 = arith.constant 1.000000e+00 : f32
    %53 = vector.broadcast %cst_19 : f32 to vector<1x32xf32>
    %54 = arith.addf %53, %52 : vector<1x32xf32>
    %55 = arith.divf %53, %54 : vector<1x32xf32>
    %56 = vector.extract_strided_slice %46 {offsets = [0, 32], sizes = [1, 32], strides = [1, 1]} : vector<1x96xf32> to vector<1x32xf32>
    %57 = vector.extract_strided_slice %47 {offsets = [0, 32], sizes = [1, 32], strides = [1, 1]} : vector<1x96xf32> to vector<1x32xf32>
    %58 = arith.addf %56, %57 : vector<1x32xf32>
    %59 = arith.negf %58 : vector<1x32xf32>
    %60 = math.exp %59 : vector<1x32xf32>
    %cst_20 = arith.constant 1.000000e+00 : f32
    %61 = vector.broadcast %cst_20 : f32 to vector<1x32xf32>
    %62 = arith.addf %61, %60 : vector<1x32xf32>
    %63 = arith.divf %61, %62 : vector<1x32xf32>
    %64 = vector.extract_strided_slice %46 {offsets = [0, 64], sizes = [1, 32], strides = [1, 1]} : vector<1x96xf32> to vector<1x32xf32>
    %65 = vector.extract_strided_slice %47 {offsets = [0, 64], sizes = [1, 32], strides = [1, 1]} : vector<1x96xf32> to vector<1x32xf32>
    %66 = arith.mulf %55, %65 : vector<1x32xf32>
    %67 = arith.addf %64, %66 : vector<1x32xf32>
    %68 = math.tanh %67 : vector<1x32xf32>
    %cst_21 = arith.constant 1.000000e+00 : f32
    %69 = vector.broadcast %cst_21 : f32 to vector<1x32xf32>
    %70 = arith.subf %69, %63 : vector<1x32xf32>
    %71 = arith.mulf %70, %68 : vector<1x32xf32>
    %72 = arith.mulf %63, %3 : vector<1x32xf32>
    %73 = arith.addf %71, %72 : vector<1x32xf32>
    %c0_22 = arith.constant 0 : index
    %c320 = arith.constant 320 : index
    %74 = vector.load %arg5[%c0_22, %c320] : memref<32x384xbf16, #tpu.memory_space<vmem>>, vector<32x64xbf16>
    %75 = arith.truncf %73 : vector<1x32xf32> to vector<1x32xbf16>
    %cst_23 = arith.constant dense<0.000000e+00> : vector<1x64xf32>
    %76 = tpu.matmul %75, %74, %cst_23 {dimension_numbers = #tpu.dot_dimension_numbers<[1], [0], [0], [1], [0, 0, 1, 1], [], []>} : vector<1x32xbf16>, vector<32x64xbf16>, vector<1x64xf32> -> vector<1x64xf32>
    %77 = arith.addf %76, %9 : vector<1x64xf32>
    %cst_24 = arith.constant dense<0xFF800000> : vector<1xf32>
    %78 = vector.multi_reduction <maximumf>, %77, %cst_24 [1] : vector<1x64xf32> to vector<1xf32>
    %79 = vector.shape_cast %78 : vector<1xf32> to vector<1x1xf32>
    %80 = vector.broadcast %79 : vector<1x1xf32> to vector<1x64xf32>
    %81 = arith.subf %77, %80 : vector<1x64xf32>
    %82 = math.exp %81 : vector<1x64xf32>
    %cst_25 = arith.constant dense<0.000000e+00> : vector<1xf32>
    %83 = vector.multi_reduction <add>, %82, %cst_25 [1] : vector<1x64xf32> to vector<1xf32>
    %84 = vector.shape_cast %83 : vector<1xf32> to vector<1x1xf32>
    %85 = math.log %84 : vector<1x1xf32>
    %86 = vector.broadcast %85 : vector<1x1xf32> to vector<1x64xf32>
    %87 = arith.subf %81, %86 : vector<1x64xf32>
    %88 = tpu.concatenate %87, %73, %31 in 1 : vector<1x64xf32>, vector<1x32xf32>, vector<1x32xf32> -> vector<1x128xf32>
    %c0_26 = arith.constant 0 : index
    %c0_27 = arith.constant 0 : index
    %89 = vector.load %arg7[%c0_26, %c0_27] : memref<1x128xf32, #tpu.memory_space<vmem>>, vector<1x128xf32>
    tpu.vector_store %arg7[%c0_26, %c0_27], %88 {strides = array<i32>} : memref<1x128xf32, #tpu.memory_space<vmem>>, vector<1x128xf32>,
    return
  }
  func.func @transform_0(%arg0: i32, %arg1: memref<1xi32, #tpu.memory_space<smem>>) -> (i32, i32) {
    %c0_i32 = arith.constant 0 : i32
    %c0_i32_0 = arith.constant 0 : i32
    %c0_i32_1 = arith.constant 0 : i32
    return %c0_i32, %c0_i32_0 : i32, i32
  }
  func.func @transform_1(%arg0: i32, %arg1: memref<1xi32, #tpu.memory_space<smem>>) -> (i32, i32) {
    %c0_i32 = arith.constant 0 : i32
    %c0_i32_0 = arith.constant 0 : i32
    %c0_i32_1 = arith.constant 0 : i32
    return %c0_i32, %c0_i32_0 : i32, i32
  }
  func.func @transform_2(%arg0: i32, %arg1: memref<1xi32, #tpu.memory_space<smem>>) -> (i32, i32) {
    %c0_i32 = arith.constant 0 : i32
    %c0_i32_0 = arith.constant 0 : i32
    %c0_i32_1 = arith.constant 0 : i32
    return %c0_i32, %c0_i32_0 : i32, i32
  }
  func.func @transform_3(%arg0: i32, %arg1: memref<1xi32, #tpu.memory_space<smem>>) -> (i32, i32) {
    %c0_i32 = arith.constant 0 : i32
    %c0_i32_0 = arith.constant 0 : i32
    %c0_i32_1 = arith.constant 0 : i32
    return %c0_i32, %c0_i32_0 : i32, i32
  }
  func.func @transform_4(%arg0: i32, %arg1: memref<1xi32, #tpu.memory_space<smem>>) -> (i32, i32) {
    %c0_i32 = arith.constant 0 : i32
    %c0_i32_0 = arith.constant 0 : i32
    %c0_i32_1 = arith.constant 0 : i32
    return %c0_i32, %c0_i32_0 : i32, i32
  }
  func.func @transform_5(%arg0: i32, %arg1: memref<1xi32, #tpu.memory_space<smem>>) -> (i32, i32) {
    %c0_i32 = arith.constant 0 : i32
    %c0_i32_0 = arith.constant 0 : i32
    %c0_i32_1 = arith.constant 0 : i32
    return %c0_i32, %c0_i32_0 : i32, i32
  }
}

</mosaic_0001>

<llo_original>
// kernel: attn_decoder_forward.1
$region0: #{attn_decoder_forward.1}
  #allocation0 [shape = 'u32[]', space=smem, size = 0x4, offset = 0x4, fixed_abs, tag = 'smem constant byte address 0x4 - core index']
  #allocation1 [shape = 'u32[144,128]{1,0:T(1,128)}', space=vmem, size = 0x12000, scoped, tag = 'internal scratch']
  #allocation2 [shape = 's32[1]{0}', space=sflag, size = 0x4, scoped, tag = 'scoped memory for attn_decoder_forward.1']
  #allocation3 [shape = 's32[1]{0:T(128)S(6)}', space=smem, size = 0x200, scoped, tag = 'prefetched SMEM operand 0']
  %s0 = inlined_call_operand.<no memory space> [shape: s32[1], index: 0, kind: input, shape index: {}]
  %s1 = inlined_call_operand.vmem [shape: f32[64,32], index: 1, kind: input, shape index: {}]
  %s2 = inlined_call_operand.vmem [shape: f32[1,32], index: 2, kind: input, shape index: {}]
  %s3 = inlined_call_operand.vmem [shape: f32[32,32], index: 3, kind: input, shape index: {}]
  %s4 = inlined_call_operand.vmem [shape: bf16[32,384], index: 4, kind: input, shape index: {}]
  %s5 = inlined_call_operand.vmem [shape: f32[1,320], index: 5, kind: input, shape index: {}]
  %s6 = inlined_call_operand.vmem [shape: f32[1,128], index: 6, kind: output, shape index: {}]
  %s7 = sld [smem:[#allocation0]]
  $region30: #{attn_decoder_forward.1} parent=0
    _
  %s9 = ssub.s32 1, %s7
  %s10 = scalar_select 0, %s9, %s7
  %11 = sst [smem:[#allocation3]] %s0
  // Predicated region
  $region2: #{attn_decoder_forward.1} parent=0 // pred_check
    _
  $region3: #{attn_decoder_forward.1} parent=0 // pred_check_branch
    %13 = sbr.rel (0) target = $region5
  $region4: #{attn_decoder_forward.1} parent=0 // pred_region
    _
  $region5: #{attn_decoder_forward.1} parent=0 // pred_fallthru
    _
  // Predicated region
  $region6: #{attn_decoder_forward.1} parent=0 // pred_check
    _
  $region7: #{attn_decoder_forward.1} parent=0 // pred_check_branch
    %15 = sbr.rel (0) target = $region9
  $region8: #{attn_decoder_forward.1} parent=0 // pred_region
    _
  $region9: #{attn_decoder_forward.1} parent=0 // pred_fallthru
    _
  // Predicated region
  $region10: #{attn_decoder_forward.1} parent=0 // pred_check
    _
  $region11: #{attn_decoder_forward.1} parent=0 // pred_check_branch
    %17 = sbr.rel (0) target = $region13
  $region12: #{attn_decoder_forward.1} parent=0 // pred_region
    _
  $region13: #{attn_decoder_forward.1} parent=0 // pred_fallthru
    _
  // Predicated region
  $region14: #{attn_decoder_forward.1} parent=0 // pred_check
    _
  $region15: #{attn_decoder_forward.1} parent=0 // pred_check_branch
    %19 = sbr.rel (0) target = $region17
  $region16: #{attn_decoder_forward.1} parent=0 // pred_region
    _
  $region17: #{attn_decoder_forward.1} parent=0 // pred_fallthru
    _
  // Predicated region
  $region18: #{attn_decoder_forward.1} parent=0 // pred_check
    _
  $region19: #{attn_decoder_forward.1} parent=0 // pred_check_branch
    %21 = sbr.rel (0) target = $region21
  $region20: #{attn_decoder_forward.1} parent=0 // pred_region
    _
  $region21: #{attn_decoder_forward.1} parent=0 // pred_fallthru
    _
  %s23 = sld [smem:[#allocation3]]
  %s24 = scalar_lea.vmem %s1, %s23
  %v25 = vld [vmem:[%s24] sm:$0x1]
  %v26 = vld [vmem:[%s2] sm:$0x1]
  %v27 = vld [vmem:[%s5] sm:$0x7]
  %v28 = vld [vmem:[%s4] sm:$0xf]
  %v29 = vld [vmem:[%s4 + $0xc] sm:$0xf]
  %v30 = vld [vmem:[%s4 + $0x18] sm:$0xf]
  %v31 = vld [vmem:[%s4 + $0x24] sm:$0xf]
  %v32 = vpack.c.bf16 %v26, %v26
  %v37 = vunpack.c.l.b16 %v28
  %v38 = vunpack.c.l.b16 %v29
  %v39 = vunpack.c.l.b16 %v30
  %v40 = vunpack.c.l.b16 %v31
  %v41 = vpack.c.b16 %v38, %v37
  %v42 = vpack.c.b16 %v40, %v39
  %vm45 = vcmask 261120
  %v47 = vsel %vm45, %v32, 0
  %49 = vmatprep.subr.bf16.mxu0 0
  %50 = vmatpush1.bf16.msra.mxu0 %v41
  %51 = vmatprep.subr.bf16.mxu0 0
  %52 = vmatpush1.bf16.msra.mxu0 %v42
  %53 = vmatprep.subr.bf16.mxu0 0
  %54 = vmatpush1.bf16.msra.mxu0 0
  %55 = vmatprep.subr.bf16.mxu0 0
  %56 = vmatpush1.bf16.msra.mxu0 0
  %57 = vmatprep.subr.bf16.mxu0 0
  %58 = vmatpush1.bf16.msra.mxu0 0
  %59 = vmatprep.subr.bf16.mxu0 0
  %60 = vmatpush1.bf16.msra.mxu0 0
  %61 = vmatprep.subr.bf16.mxu0 0
  %62 = vmatpush1.bf16.msra.mxu0 0
  %63 = vmatprep.subr.bf16.mxu0 0
  %64 = vmatpush1.bf16.msra.mxu0 0
  %65 = vmatprep.subr.bf16.mxu0 0
  %66 = vmatpush1.bf16.msra.mxu0 0
  %67 = vmatprep.subr.bf16.mxu0 0
  %68 = vmatpush1.bf16.msra.mxu0 0
  %69 = vmatprep.subr.bf16.mxu0 0
  %70 = vmatpush1.bf16.msra.mxu0 0
  %71 = vmatprep.subr.bf16.mxu0 0
  %72 = vmatpush1.bf16.msra.mxu0 0
  %73 = vmatprep.subr.bf16.mxu0 0
  %74 = vmatpush1.bf16.msra.mxu0 0
  %75 = vmatprep.subr.bf16.mxu0 0
  %76 = vmatpush1.bf16.msra.mxu0 0
  %77 = vmatprep.subr.bf16.mxu0 0
  %78 = vmatpush1.bf16.msra.mxu0 0
  %79 = vmatprep.subr.bf16.mxu0 0
  %80 = vmatpush1.bf16.msra.mxu0 0
  %81 = vmatprep.mubr.bf16.mxu0 0
  %82 = vmatmul.mubr.bf16.gmra.mrb[0].mxu0 %v47
  %v83 = vpop.f32.mrb[0].mxu0
  %v84 = vadd.f32 0.0, %v83
  %v85 = vpop.f32.mrb[0].mxu0
  %v86 = vpop.f32.mrb[0].mxu0
  %v87 = vpop.f32.mrb[0].mxu0
  %88 = vdwg.mxu0
  %v89 = vld [vmem:[%s4 + $0x4] sm:$0xf]
  %v90 = vld [vmem:[%s4 + $0x10] sm:$0xf]
  %v91 = vld [vmem:[%s4 + $0x1c] sm:$0xf]
  %v92 = vld [vmem:[%s4 + $0x28] sm:$0xf]
  %v93 = vpack.c.bf16 %v25, %v25
  %v98 = vunpack.c.l.b16 %v89
  %v99 = vunpack.c.l.b16 %v90
  %v100 = vunpack.c.l.b16 %v91
  %v101 = vunpack.c.l.b16 %v92
  %v102 = vpack.c.b16 %v99, %v98
  %v103 = vpack.c.b16 %v101, %v100
  %v107 = vsel %vm45, %v93, 0
  %109 = vmatprep.subr.bf16.mxu0 0
  %110 = vmatpush1.bf16.msra.mxu0 %v102
  %111 = vmatprep.subr.bf16.mxu0 0
  %112 = vmatpush1.bf16.msra.mxu0 %v103
  %113 = vmatprep.subr.bf16.mxu0 0
  %114 = vmatpush1.bf16.msra.mxu0 0
  %115 = vmatprep.subr.bf16.mxu0 0
  %116 = vmatpush1.bf16.msra.mxu0 0
  %117 = vmatprep.subr.bf16.mxu0 0
  %118 = vmatpush1.bf16.msra.mxu0 0
  %119 = vmatprep.subr.bf16.mxu0 0
  %120 = vmatpush1.bf16.msra.mxu0 0
  %121 = vmatprep.subr.bf16.mxu0 0
  %122 = vmatpush1.bf16.msra.mxu0 0
  %123 = vmatprep.subr.bf16.mxu0 0
  %124 = vmatpush1.bf16.msra.mxu0 0
  %125 = vmatprep.subr.bf16.mxu0 0
  %126 = vmatpush1.bf16.msra.mxu0 0
  %127 = vmatprep.subr.bf16.mxu0 0
  %128 = vmatpush1.bf16.msra.mxu0 0
  %129 = vmatprep.subr.bf16.mxu0 0
  %130 = vmatpush1.bf16.msra.mxu0 0
  %131 = vmatprep.subr.bf16.mxu0 0
  %132 = vmatpush1.bf16.msra.mxu0 0
  %133 = vmatprep.subr.bf16.mxu0 0
  %134 = vmatpush1.bf16.msra.mxu0 0
  %135 = vmatprep.subr.bf16.mxu0 0
  %136 = vmatpush1.bf16.msra.mxu0 0
  %137 = vmatprep.subr.bf16.mxu0 0
  %138 = vmatpush1.bf16.msra.mxu0 0
  %139 = vmatprep.subr.bf16.mxu0 0
  %140 = vmatpush1.bf16.msra.mxu0 0
  %141 = vmatprep.mubr.bf16.mxu0 0
  %142 = vmatmul.mubr.bf16.gmra.mrb[0].mxu0 %v107
  %v143 = vpop.f32.mrb[0].mxu0
  %v144 = vadd.f32 0.0, %v143
  %v145 = vpop.f32.mrb[0].mxu0
  %v146 = vpop.f32.mrb[0].mxu0
  %v147 = vpop.f32.mrb[0].mxu0
  %148 = vdwg.mxu0
  %v149 = vadd.f32 %v144, %v84
  %v150 = vadd.f32 %v149, %v27
  %vm151 = vcmask 253952
  %v152 = vsel %vm151, %v150, -inf
  %153 = vmax.xlane.f32.xlu0 %v152
  %v154 = vpop.xlane.xlu0 %153
  %v155 = vsub.f32 %v150, %v154
  %v156 = vmul.f32 %v155, 1.442695
  %v157 = vpow.pop %v156
  %v158 = vsel %vm151, %v157, 0.0
  %159 = vadd.xlane.f32.xlu0 %v158
  %v160 = vpop.xlane.xlu0 %159
  %v161 = vrcp.pop %v160
  %v162 = vmul.f32 %v157, %v161
  %v163 = vld [vmem:[%s3] sm:$0xff]
  %v164 = vld [vmem:[%s3 + $0x8] sm:$0xff]
  %v165 = vld [vmem:[%s3 + $0x10] sm:$0xff]
  %v166 = vld [vmem:[%s3 + $0x18] sm:$0xff]
  %v167 = vpack.c.bf16 %v162, %v162
  %v168 = vpack.c.bf16 %v164, %v163
  %v169 = vpack.c.bf16 %v166, %v165
  %v171 = vsel %vm45, %v167, 0
  %173 = vmatprep.subr.bf16.mxu0 0
  %174 = vmatpush1.bf16.msra.mxu0 %v168
  %175 = vmatprep.subr.bf16.mxu0 0
  %176 = vmatpush1.bf16.msra.mxu0 %v169
  %177 = vmatprep.subr.bf16.mxu0 0
  %178 = vmatpush1.bf16.msra.mxu0 0
  %179 = vmatprep.subr.bf16.mxu0 0
  %180 = vmatpush1.bf16.msra.mxu0 0
  %181 = vmatprep.subr.bf16.mxu0 0
  %182 = vmatpush1.bf16.msra.mxu0 0
  %183 = vmatprep.subr.bf16.mxu0 0
  %184 = vmatpush1.bf16.msra.mxu0 0
  %185 = vmatprep.subr.bf16.mxu0 0
  %186 = vmatpush1.bf16.msra.mxu0 0
  %187 = vmatprep.subr.bf16.mxu0 0
  %188 = vmatpush1.bf16.msra.mxu0 0
  %189 = vmatprep.subr.bf16.mxu0 0
  %190 = vmatpush1.bf16.msra.mxu0 0
  %191 = vmatprep.subr.bf16.mxu0 0
  %192 = vmatpush1.bf16.msra.mxu0 0
  %193 = vmatprep.subr.bf16.mxu0 0
  %194 = vmatpush1.bf16.msra.mxu0 0
  %195 = vmatprep.subr.bf16.mxu0 0
  %196 = vmatpush1.bf16.msra.mxu0 0
  %197 = vmatprep.subr.bf16.mxu0 0
  %198 = vmatpush1.bf16.msra.mxu0 0
  %199 = vmatprep.subr.bf16.mxu0 0
  %200 = vmatpush1.bf16.msra.mxu0 0
  %201 = vmatprep.subr.bf16.mxu0 0
  %202 = vmatpush1.bf16.msra.mxu0 0
  %203 = vmatprep.subr.bf16.mxu0 0
  %204 = vmatpush1.bf16.msra.mxu0 0
  %205 = vmatprep.mubr.bf16.mxu0 0
  %206 = vmatmul.mubr.bf16.gmra.mrb[0].mxu0 %v171
  %v207 = vpop.f32.mrb[0].mxu0
  %v208 = vadd.f32 0.0, %v207
  %v209 = vpop.f32.mrb[0].mxu0
  %v210 = vpop.f32.mrb[0].mxu0
  %v211 = vpop.f32.mrb[0].mxu0
  %212 = vdwg.mxu0
  %v213 = vpack.c.bf16 %v208, %v208
  %214 = vrot.lane.b32.xlu0 %v102, 64
  %v215 = vpop.permute.xlu0 %214
  %216 = vrot.lane.b32.xlu0 %v103, 64
  %v217 = vpop.permute.xlu0 %216
  %v221 = vsel %vm45, %v213, 0
  %223 = vmatprep.subr.bf16.mxu0 0
  %224 = vmatpush1.bf16.msra.mxu0 %v215
  %225 = vmatprep.subr.bf16.mxu0 0
  %226 = vmatpush1.bf16.msra.mxu0 %v217
  %227 = vmatprep.subr.bf16.mxu0 0
  %228 = vmatpush1.bf16.msra.mxu0 0
  %229 = vmatprep.subr.bf16.mxu0 0
  %230 = vmatpush1.bf16.msra.mxu0 0
  %231 = vmatprep.subr.bf16.mxu0 0
  %232 = vmatpush1.bf16.msra.mxu0 0
  %233 = vmatprep.subr.bf16.mxu0 0
  %234 = vmatpush1.bf16.msra.mxu0 0
  %235 = vmatprep.subr.bf16.mxu0 0
  %236 = vmatpush1.bf16.msra.mxu0 0
  %237 = vmatprep.subr.bf16.mxu0 0
  %238 = vmatpush1.bf16.msra.mxu0 0
  %239 = vmatprep.subr.bf16.mxu0 0
  %240 = vmatpush1.bf16.msra.mxu0 0
  %241 = vmatprep.subr.bf16.mxu0 0
  %242 = vmatpush1.bf16.msra.mxu0 0
  %243 = vmatprep.subr.bf16.mxu0 0
  %244 = vmatpush1.bf16.msra.mxu0 0
  %245 = vmatprep.subr.bf16.mxu0 0
  %246 = vmatpush1.bf16.msra.mxu0 0
  %247 = vmatprep.subr.bf16.mxu0 0
  %248 = vmatpush1.bf16.msra.mxu0 0
  %249 = vmatprep.subr.bf16.mxu0 0
  %250 = vmatpush1.bf16.msra.mxu0 0
  %251 = vmatprep.subr.bf16.mxu0 0
  %252 = vmatpush1.bf16.msra.mxu0 0
  %253 = vmatprep.subr.bf16.mxu0 0
  %254 = vmatpush1.bf16.msra.mxu0 0
  %255 = vmatprep.mubr.bf16.mxu0 0
  %256 = vmatmul.mubr.bf16.gmra.mrb[0].mxu0 %v221
  %v257 = vpop.f32.mrb[0].mxu0
  %v258 = vadd.f32 0.0, %v257
  %v259 = vpop.f32.mrb[0].mxu0
  %v260 = vpop.f32.mrb[0].mxu0
  %v261 = vpop.f32.mrb[0].mxu0
  %262 = vdwg.mxu0
  %264 = vrot.lane.b32.xlu0 %v258, 32
  %v265 = vpop.permute.xlu0 %264
  %v267 = vadd.f32 %v144, %v265
  %v268 = vadd.f32 %v267, %v27
  %v269 = vmax.f32 %v268, 0.0
  %v270 = vld [vmem:[%s4 + $0x4] sm:$0xff]
  %v271 = vld [vmem:[%s4 + $0x10] sm:$0xff]
  %v272 = vld [vmem:[%s4 + $0x1c] sm:$0xff]
  %v273 = vld [vmem:[%s4 + $0x28] sm:$0xff]
  %v274 = vpack.c.bf16 %v269, %v269
  %276 = vrot.lane.b32.xlu0 %v274, 96
  %v277 = vpop.permute.xlu0 %276
  %v282 = vunpack.c.l.b16 %v270
  %v283 = vunpack.c.h.b16 %v270
  %v284 = vunpack.c.l.b16 %v271
  %v285 = vunpack.c.h.b16 %v271
  %v286 = vunpack.c.l.b16 %v272
  %v287 = vunpack.c.h.b16 %v272
  %v288 = vunpack.c.l.b16 %v273
  %v289 = vunpack.c.h.b16 %v273
  %v290 = vpack.c.b16 %v284, %v282
  %v291 = vpack.c.b16 %v285, %v283
  %v292 = vpack.c.b16 %v288, %v286
  %v293 = vpack.c.b16 %v289, %v287
  %294 = vrot.lane.b32.xlu0 %v290, 32
  %v295 = vpop.permute.xlu0 %294
  %296 = vrot.lane.b32.xlu0 %v291, 32
  %v297 = vpop.permute.xlu0 %296
  %298 = vrot.lane.b32.xlu0 %v292, 32
  %v299 = vpop.permute.xlu0 %298
  %300 = vrot.lane.b32.xlu0 %v293, 32
  %v301 = vpop.permute.xlu0 %300
  %vm302 = vcmask 261120
  %v303 = vsel %vm302, %v295, %v297
  %v304 = vsel %vm302, %v299, %v301
  %v308 = vlaneseq
  %v309 = vshrl.u32 %v308, 7
  %v310 = vsub.s32 0, %v309
  %v311 = vrot.slane %v27, %v310
  %v312 = vlaneseq
  %v313 = vshrl.u32 %v312, 7
  %v314 = vsub.s32 1, %v313
  %v315 = vrot.slane %v27, %v314
  %316 = vrot.lane.b32.xlu0 %v311, 64
  %v317 = vpop.permute.xlu0 %316
  %318 = vrot.lane.b32.xlu0 %v315, 64
  %v319 = vpop.permute.xlu0 %318
  %vm320 = vcmask 523264
  %v321 = vsel %vm320, %v317, %v319
  %v324 = vsel %vm45, %v277, 0
  %326 = vmatprep.subr.bf16.mxu0 0
  %327 = vmatpush1.bf16.msra.mxu0 %v303
  %328 = vmatprep.subr.bf16.mxu0 0
  %329 = vmatpush1.bf16.msra.mxu0 %v304
  %330 = vmatprep.subr.bf16.mxu0 0
  %331 = vmatpush1.bf16.msra.mxu0 0
  %332 = vmatprep.subr.bf16.mxu0 0
  %333 = vmatpush1.bf16.msra.mxu0 0
  %334 = vmatprep.subr.bf16.mxu0 0
  %335 = vmatpush1.bf16.msra.mxu0 0
  %336 = vmatprep.subr.bf16.mxu0 0
  %337 = vmatpush1.bf16.msra.mxu0 0
  %338 = vmatprep.subr.bf16.mxu0 0
  %339 = vmatpush1.bf16.msra.mxu0 0
  %340 = vmatprep.subr.bf16.mxu0 0
  %341 = vmatpush1.bf16.msra.mxu0 0
  %342 = vmatprep.subr.bf16.mxu0 0
  %343 = vmatpush1.bf16.msra.mxu0 0
  %344 = vmatprep.subr.bf16.mxu0 0
  %345 = vmatpush1.bf16.msra.mxu0 0
  %346 = vmatprep.subr.bf16.mxu0 0
  %347 = vmatpush1.bf16.msra.mxu0 0
  %348 = vmatprep.subr.bf16.mxu0 0
  %349 = vmatpush1.bf16.msra.mxu0 0
  %350 = vmatprep.subr.bf16.mxu0 0
  %351 = vmatpush1.bf16.msra.mxu0 0
  %352 = vmatprep.subr.bf16.mxu0 0
  %353 = vmatpush1.bf16.msra.mxu0 0
  %354 = vmatprep.subr.bf16.mxu0 0
  %355 = vmatpush1.bf16.msra.mxu0 0
  %356 = vmatprep.subr.bf16.mxu0 0
  %357 = vmatpush1.bf16.msra.mxu0 0
  %358 = vmatprep.mubr.bf16.mxu0 0
  %359 = vmatmul.mubr.bf16.gmra.mrb[0].mxu0 %v324
  %v360 = vpop.f32.mrb[0].mxu0
  %v361 = vadd.f32 %v321, %v360
  %v362 = vpop.f32.mrb[0].mxu0
  %v363 = vpop.f32.mrb[0].mxu0
  %v364 = vpop.f32.mrb[0].mxu0
  %365 = vdwg.mxu0
  %v367 = vadd.f32 %v84, %v315
  %369 = vrot.lane.b32.xlu0 %v367, 96
  %v370 = vpop.permute.xlu0 %369
  %v372 = vadd.f32 %v361, %v370
  %v373 = vxor.u32 %v372, 2147483648
  %v374 = vmul.f32 %v373, 1.442695
  %v375 = vpow.pop %v374
  %v376 = vadd.f32 %v375, 1.0
  %v377 = vrcp.pop %v376
  %v378 = vmul.f32 1.0, %v377
  %379 = vrot.lane.b32.xlu0 %v367, 32
  %v380 = vpop.permute.xlu0 %379
  %v382 = vmul.f32 %v378, %v380
  %384 = vrot.lane.b32.xlu0 %v382, 64
  %v385 = vpop.permute.xlu0 %384
  %v387 = vadd.f32 %v361, %v385
  %v388 = vtanh.pop %v387
  %v389 = vsub.f32 1.0, %v378
  %391 = vrot.lane.b32.xlu0 %v388, 96
  %v392 = vpop.permute.xlu0 %391
  %v394 = vmul.f32 %v389, %v392
  %v396 = vlaneseq
  %v397 = vshrl.u32 %v396, 7
  %v398 = vsub.s32 0, %v397
  %v399 = vrot.slane %v26, %v398
  %400 = vrot.lane.b32.xlu0 %v399, 32
  %v401 = vpop.permute.xlu0 %400
  %v403 = vmul.f32 %v378, %v401
  %v404 = vadd.f32 %v394, %v403
  %v405 = vld [vmem:[%s4 + $0x8] sm:$0xf]
  %v406 = vld [vmem:[%s4 + $0x14] sm:$0xf]
  %v407 = vld [vmem:[%s4 + $0x20] sm:$0xf]
  %v408 = vld [vmem:[%s4 + $0x2c] sm:$0xf]
  %v409 = vpack.c.bf16 %v404, %v404
  %411 = vrot.lane.b32.xlu0 %v409, 96
  %v412 = vpop.permute.xlu0 %411
  %v417 = vunpack.c.l.b16 %v405
  %v418 = vunpack.c.l.b16 %v406
  %v419 = vunpack.c.l.b16 %v407
  %v420 = vunpack.c.l.b16 %v408
  %v421 = vpack.c.b16 %v418, %v417
  %v422 = vpack.c.b16 %v420, %v419
  %423 = vrot.lane.b32.xlu0 %v421, 64
  %v424 = vpop.permute.xlu0 %423
  %425 = vrot.lane.b32.xlu0 %v422, 64
  %v426 = vpop.permute.xlu0 %425
  %v429 = vlaneseq
  %v430 = vshrl.u32 %v429, 7
  %v431 = vsub.s32 2, %v430
  %v432 = vrot.slane %v27, %v431
  %v435 = vsel %vm45, %v412, 0
  %437 = vmatprep.subr.bf16.mxu0 0
  %438 = vmatpush1.bf16.msra.mxu0 %v424
  %439 = vmatprep.subr.bf16.mxu0 0
  %440 = vmatpush1.bf16.msra.mxu0 %v426
  %441 = vmatprep.subr.bf16.mxu0 0
  %442 = vmatpush1.bf16.msra.mxu0 0
  %443 = vmatprep.subr.bf16.mxu0 0
  %444 = vmatpush1.bf16.msra.mxu0 0
  %445 = vmatprep.subr.bf16.mxu0 0
  %446 = vmatpush1.bf16.msra.mxu0 0
  %447 = vmatprep.subr.bf16.mxu0 0
  %448 = vmatpush1.bf16.msra.mxu0 0
  %449 = vmatprep.subr.bf16.mxu0 0
  %450 = vmatpush1.bf16.msra.mxu0 0
  %451 = vmatprep.subr.bf16.mxu0 0
  %452 = vmatpush1.bf16.msra.mxu0 0
  %453 = vmatprep.subr.bf16.mxu0 0
  %454 = vmatpush1.bf16.msra.mxu0 0
  %455 = vmatprep.subr.bf16.mxu0 0
  %456 = vmatpush1.bf16.msra.mxu0 0
  %457 = vmatprep.subr.bf16.mxu0 0
  %458 = vmatpush1.bf16.msra.mxu0 0
  %459 = vmatprep.subr.bf16.mxu0 0
  %460 = vmatpush1.bf16.msra.mxu0 0
  %461 = vmatprep.subr.bf16.mxu0 0
  %462 = vmatpush1.bf16.msra.mxu0 0
  %463 = vmatprep.subr.bf16.mxu0 0
  %464 = vmatpush1.bf16.msra.mxu0 0
  %465 = vmatprep.subr.bf16.mxu0 0
  %466 = vmatpush1.bf16.msra.mxu0 0
  %467 = vmatprep.subr.bf16.mxu0 0
  %468 = vmatpush1.bf16.msra.mxu0 0
  %469 = vmatprep.mubr.bf16.mxu0 0
  %470 = vmatmul.mubr.bf16.gmra.mrb[0].mxu0 %v435
  %v471 = vpop.f32.mrb[0].mxu0
  %v472 = vadd.f32 %v432, %v471
  %v473 = vpop.f32.mrb[0].mxu0
  %v474 = vpop.f32.mrb[0].mxu0
  %v475 = vpop.f32.mrb[0].mxu0
  %476 = vdwg.mxu0
  %vm477 = vcmask 516096
  %v478 = vsel %vm477, %v472, -inf
  %479 = vmax.xlane.f32.xlu0 %v478
  %v480 = vpop.xlane.xlu0 %479
  %v481 = vsub.f32 %v472, %v480
  %v482 = vmul.f32 %v481, 1.442695
  %v483 = vpow.pop %v482
  %v484 = vsel %vm477, %v483, 0.0
  %485 = vadd.xlane.f32.xlu0 %v484
  %v486 = vpop.xlane.xlu0 %485
  %v487 = vlog2.pop %v486
  %v488 = vmul.f32 %v487, 0.6931472
  %v489 = vsub.f32 %v481, %v488
  %491 = vrot.lane.b32.xlu0 %v404, 32
  %v492 = vpop.permute.xlu0 %491
  %495 = vrot.lane.b32.xlu0 %v162, 96
  %v496 = vpop.permute.xlu0 %495
  %v498 = vsel %vm320, %v489, %v492
  %vm499 = vcmask 785408
  %v500 = vsel %vm499, %v498, %v496
  %501 = vst [vmem:[%s6] sm:$0x1] %v500
  // Predicated region
  $region22: #{attn_decoder_forward.1} parent=0 // pred_check
    _
  $region23: #{attn_decoder_forward.1} parent=0 // pred_check_branch
    %503 = sbr.rel (0) target = $region25
  $region24: #{attn_decoder_forward.1} parent=0 // pred_region
    _
  $region25: #{attn_decoder_forward.1} parent=0 // pred_fallthru
    _
  // Predicated region
  $region26: #{attn_decoder_forward.1} parent=0 // pred_check
    _
  $region27: #{attn_decoder_forward.1} parent=0 // pred_check_branch
    %505 = sbr.rel (0) target = $region29
  $region28: #{attn_decoder_forward.1} parent=0 // pred_region
    _
  $region29: #{attn_decoder_forward.1} parent=0 // pred_fallthru
    _

</llo_original>
